<compile_context>
chip_gen: v7x
topology: tpu7x:2x2x1
jax: 0.10.0
libtpu: 0.0.40
codegen_flags: <defaults>
</compile_context>

<pallas_src>
import numpy as np

import jax
import jax.numpy as jnp
from jax.experimental import pallas as pl
from jax.experimental.pallas import tpu as pltpu


# Head order inside the fused weight slab: dist/omega are symmetric,
# theta/phi are asymmetric (asymmetry=True in the PyTorch module).
_HEADS = ("dist", "omega", "theta", "phi")


def _fused_pair_kernel(bid_ref, row_ref, col_ref,            # scalar prefetch (SMEM)
                       zij_ref, zji_ref, wd_ref, wc_ref, b_ref,  # inputs (VMEM)
                       out_ref,                               # output (HBM, pl.ANY)
                       out_buf, sem):                         # scratch
    """One step = one (batch, i<=j block pair): writes output tiles (i,j) and (j,i).

    zij_ref : (1, T, T, C)   z[b, iT:(i+1)T, jT:(j+1)T, :]
    zji_ref : (1, T, T, C)   z[b, jT:(j+1)T, iT:(i+1)T, :]
    wd_ref  : (C, NB_PAD)    [0.5*W_dist | 0.5*W_omega | W_theta | W_phi | 0pad]
    wc_ref  : (C, NB_PAD)    [0.5*W_dist | 0.5*W_omega |    0    |   0   | 0pad]
    b_ref   : (1, NB_PAD)    fused bias, f32
    out_ref : (B, Np, Np, NB_PAD) full output array in HBM (manual DMA writes)
    out_buf : (2, T, T, NB_PAD) VMEM staging for the two destination tiles
    """
    g = pl.program_id(0)
    b = bid_ref[g]
    i = row_ref[g]
    j = col_ref[g]

    t = zij_ref.shape[1]
    c = zij_ref.shape[3]
    nb = wd_ref.shape[1]

    wd = wd_ref[...]
    wc = wc_ref[...]
    bias = b_ref[...]                     # (1, nb), f32

    zij = zij_ref[0]                      # (t, t, c): rows of block i, cols of block j
    zji = zji_ref[0]                      # (t, t, c): rows of block j, cols of block i

    zij2d = zij.reshape(t * t, c)
    zji2d = zji.reshape(t * t, c)
    # Transposing the (narrow-lane) z tile puts the "cross" matmul output
    # directly in destination (row, col) order -> no (t, t, 128) f32 transpose.
    zji_t2d = jnp.transpose(zji, (1, 0, 2)).reshape(t * t, c)

    def mm(x, w):
        return jnp.dot(x, w, preferred_element_type=jnp.float32)

    # Output tile (i, j):
    #   sym lanes : 0.5*(W z[r,c] + W z[c,r]) + b      (0.5 folded into wd/wc)
    #   asym lanes:      W z[r,c]             + b      (wc columns are zero)
    out_ij = (mm(zij2d, wd) + mm(zji_t2d, wc) + bias).reshape(t, t, nb)
    out_buf[0] = out_ij.astype(out_buf.dtype)

    row0 = pl.multiple_of(i * t, t)
    col0 = pl.multiple_of(j * t, t)
    cp_ij = pltpu.make_async_copy(
        out_buf.at[0],
        out_ref.at[b, pl.ds(row0, t), pl.ds(col0, t), :],
        sem.at[0])
    cp_ij.start()

    @pl.when(i != j)
    def _():
        # Output tile (j, i) reuses the same two z tiles (no extra HBM read).
        zij_t2d = jnp.transpose(zij, (1, 0, 2)).reshape(t * t, c)
        out_ji = (mm(zji2d, wd) + mm(zij_t2d, wc) + bias).reshape(t, t, nb)
        out_buf[1] = out_ji.astype(out_buf.dtype)
        cp_ji = pltpu.make_async_copy(
            out_buf.at[1],
            out_ref.at[b, pl.ds(col0, t), pl.ds(row0, t), :],
            sem.at[1])
        cp_ji.start()
        cp_ji.wait()

    # Wait before the next grid step reuses the staging buffer.
    cp_ij.wait()


def _vmem_capacity_bytes():
    try:
        return int(pltpu.get_tpu_info().vmem_capacity_bytes)
    except Exception:
        return 128 * 1024 * 1024


def _select_tile(n, c, in_bytes, nb_pad, vmem_limit_bytes):
    """Largest multiple-of-8 tile whose pipelined buffers fit comfortably."""
    t = 128 if vmem_limit_bytes > 64 * 1024 * 1024 else 64   # v7x: 64-MiB VMEM -> T=64

    def footprint(tt):
        # 2 z tiles x 2 pipeline buffers (bf16/f32) + 2-slot f32 output staging
        return 4 * tt * tt * c * in_bytes + 2 * tt * tt * nb_pad * 4

    while t > 16 and footprint(t) > vmem_limit_bytes // 2:
        t //= 2
    n8 = -(-n // 8) * 8
    return min(t, n8)


def auxiliary_heads_forward(z, params, *, tile_n=None,
                            compute_dtype=jnp.bfloat16, fused_output=False):
    """AuxiliaryHeads.forward(s, z) — `s` is unused by the module's forward.

    z: [B, N_res, N_res, C_z] float32 pair embedding
    params: {head: {"w": (C_z, no_bins), "b": (no_bins,)}} for dist/omega/theta/phi.
    Returns dict of logits [B, N, N, no_bins] per head (or the fused 128-lane
    slab + per-head offsets when fused_output=True).
    """
    B, N, N2, C = z.shape
    assert N == N2, "pair embedding must be square over N_res"

    ws = [params[h]["w"].astype(jnp.float32) for h in _HEADS]
    bs = [params[h]["b"].astype(jnp.float32) for h in _HEADS]
    nbs = [int(w.shape[1]) for w in ws]
    nb_sym = nbs[0] + nbs[1]                  # dist + omega bins are symmetrized
    nb_total = sum(nbs)
    nb_pad = ((nb_total + 127) // 128) * 128  # lane-dense output width (kept at 128)

    # Fused, pre-scaled weight slabs (stay resident in VMEM across all steps).
    w_cat = jnp.concatenate(ws, axis=1)                       # (C, nb_total)
    lane = jnp.arange(nb_total)
    sym_half = jnp.where(lane < nb_sym, 0.5, 1.0)
    cross_keep = jnp.where(lane < nb_sym, 1.0, 0.0)
    w_direct = jnp.zeros((C, nb_pad), compute_dtype).at[:, :nb_total].set(
        (w_cat * sym_half).astype(compute_dtype))
    w_cross = jnp.zeros((C, nb_pad), compute_dtype).at[:, :nb_total].set(
        (w_cat * sym_half * cross_keep).astype(compute_dtype))
    b_all = jnp.zeros((1, nb_pad), jnp.float32).at[:, :nb_total].set(
        jnp.concatenate(bs)[None, :])

    # Generation-aware VMEM budget & tile size.
    vmem_cap = _vmem_capacity_bytes()
    vmem_limit = min(int(0.75 * vmem_cap), 112 * 1024 * 1024)
    in_bytes = jnp.dtype(compute_dtype).itemsize
    t = _select_tile(N, C, in_bytes, nb_pad, vmem_limit) if tile_n is None else int(tile_n)
    assert t % 8 == 0, "tile_n must be a multiple of 8"

    # Pad N_res up to the tile instead of dropping to tiny tiles.
    n_pad = -(-N // t) * t
    z_c = z.astype(compute_dtype)
    if n_pad != N:
        z_c = jnp.pad(z_c, ((0, 0), (0, n_pad - N), (0, n_pad - N), (0, 0)))
    nblk = n_pad // t

    # Upper-triangular block-pair schedule, flattened with batch into one axis.
    iu_r, iu_c = np.triu_indices(nblk)
    p = iu_r.shape[0]
    bids = jnp.asarray(np.repeat(np.arange(B, dtype=np.int32), p))
    rows = jnp.asarray(np.tile(iu_r.astype(np.int32), B))
    cols = jnp.asarray(np.tile(iu_c.astype(np.int32), B))
    grid = (int(B * p),)

    out = pl.pallas_call(
        _fused_pair_kernel,
        out_shape=jax.ShapeDtypeStruct((B, n_pad, n_pad, nb_pad), jnp.float32),
        grid_spec=pltpu.PrefetchScalarGridSpec(
            num_scalar_prefetch=3,
            grid=grid,
            in_specs=[
                # (i, j) tile of z
                pl.BlockSpec((1, t, t, C),
                             lambda g, bid, row, col: (bid[g], row[g], col[g], 0)),
                # swapped (j, i) tile of z
                pl.BlockSpec((1, t, t, C),
                             lambda g, bid, row, col: (bid[g], col[g], row[g], 0)),
                # fused weights / bias: constant index maps -> resident in VMEM
                pl.BlockSpec((C, nb_pad), lambda g, bid, row, col: (0, 0)),
                pl.BlockSpec((C, nb_pad), lambda g, bid, row, col: (0, 0)),
                pl.BlockSpec((1, nb_pad), lambda g, bid, row, col: (0, 0)),
            ],
            # Two destination tiles per step -> write via manual DMA.
            out_specs=pl.BlockSpec(memory_space=pl.ANY),
            scratch_shapes=[
                pltpu.VMEM((2, t, t, nb_pad), jnp.float32),
                pltpu.SemaphoreType.DMA((2,)),
            ],
        ),
        compiler_params=pltpu.CompilerParams(
            dimension_semantics=("parallel",),
            vmem_limit_bytes=vmem_limit,
        ),
    )(bids, rows, cols, z_c, z_c, w_direct, w_cross, b_all)

    if n_pad != N:
        out = out[:, :N, :N, :]

    offsets, o = {}, 0
    for h, nb in zip(_HEADS, nbs):
        offsets[h] = (o, o + nb)
        o += nb

    if fused_output:
        # Preferred path: consumers read the fused 128-lane slab directly and
        # avoid XLA materializing four sliced copies of the output.
        return out, offsets

    # TODO(synk): downstream losses should use fused_output=True; the per-head
    # slices below force XLA to rewrite ~nb_total/128 of the slab as new arrays.
    return {f"{h}6d_logits": out[..., offsets[h][0]:offsets[h][1]] for h in _HEADS}


def _reference_forward(z, params):
    """Pure-JAX f32 reference reproducing the PyTorch semantics."""
    def head(w, b, symmetric):
        logits = jnp.einsum("bijc,cn->bijn", z, w) + b
        if symmetric:
            logits = (logits + jnp.swapaxes(logits, -2, -3)) / 2
        return logits

    return {
        "dist6d_logits": head(params["dist"]["w"], params["dist"]["b"], True),
        "omega6d_logits": head(params["omega"]["w"], params["omega"]["b"], True),
        "theta6d_logits": head(params["theta"]["w"], params["theta"]["b"], False),
        "phi6d_logits": head(params["phi"]["w"], params["phi"]["b"], False),
    }


if __name__ == "__main__":
    # Small config consistent with the trRosetta-style 6D distogram heads.
    B, N, C_Z = 2, 16, 32
    NO_BINS = {"dist": 37, "omega": 25, "theta": 25, "phi": 13}

    key = jax.random.PRNGKey(0)
    key, kz, ks = jax.random.split(key, 3)
    z = jax.random.normal(kz, (B, N, N, C_Z), dtype=jnp.float32)
    s = jax.random.normal(ks, (B, N, C_Z), dtype=jnp.float32)  # unused by forward

    params = {}
    for name in _HEADS:
        nb = NO_BINS[name]
        key, kw, kb = jax.random.split(key, 3)
        params[name] = {
            "w": 0.02 * jax.random.normal(kw, (C_Z, nb), dtype=jnp.float32),
            "b": 0.01 * jax.random.normal(kb, (nb,), dtype=jnp.float32),
        }

    ref = _reference_forward(z, params)

    # 1) f32 compute, tile_n=8 so the small test exercises the off-diagonal
    #    pair path (diag + 2 written tiles per step); tight tolerance.
    out_f32 = auxiliary_heads_forward(z, params, tile_n=8,
                                      compute_dtype=jnp.float32)
    out_f32 = jax.tree_util.tree_map(jax.block_until_ready, out_f32)
    for k in ref:
        assert out_f32[k].shape == ref[k].shape, (k, out_f32[k].shape, ref[k].shape)
        assert jnp.allclose(out_f32[k], ref[k], atol=1e-5, rtol=1e-5), k

    # 2) Default (bf16 compute, auto tile / vmem selection); relaxed tolerance.
    out_bf16 = auxiliary_heads_forward(z, params)
    out_bf16 = jax.tree_util.tree_map(jax.block_until_ready, out_bf16)
    for k in ref:
        assert jnp.allclose(out_bf16[k], ref[k], atol=3e-3, rtol=2e-2), k

    # 3) N_res not divisible by the tile -> exercises the zero-padding path.
    z_odd = z[:, :12, :12, :]
    ref_odd = _reference_forward(z_odd, params)
    out_odd = auxiliary_heads_forward(z_odd, params)
    out_odd = jax.tree_util.tree_map(jax.block_until_ready, out_odd)
    for k in ref_odd:
        assert out_odd[k].shape == ref_odd[k].shape, (k, out_odd[k].shape)
        assert jnp.allclose(out_odd[k], ref_odd[k], atol=3e-3, rtol=2e-2), k

    print("KERNEL_OK")
</pallas_src>

<mosaic_0001>
module attributes {stable_mosaic.version = 11 : i64} {
  func.func @_fused_pair_kernel(%arg0: i32, %arg1: memref<6xi32, #tpu.memory_space<smem>>, %arg2: memref<6xi32, #tpu.memory_space<smem>>, %arg3: memref<6xi32, #tpu.memory_space<smem>>, %arg4: memref<1x8x8x32xf32, #tpu.memory_space<vmem>>, %arg5: memref<1x8x8x32xf32, #tpu.memory_space<vmem>>, %arg6: memref<32x128xf32, #tpu.memory_space<vmem>>, %arg7: memref<32x128xf32, #tpu.memory_space<vmem>>, %arg8: memref<1x128xf32, #tpu.memory_space<vmem>>, %arg9: memref<2x16x16x128xf32, #tpu.memory_space<any>>, %arg10: memref<2x8x8x128xf32, #tpu.memory_space<vmem>>, %arg11: memref<2x!tpu.dma_semaphore, #tpu.memory_space<semaphore_mem>>) attributes {dimension_semantics = [#tpu.dimension_semantics<parallel>], iteration_bounds = array<i64: 6>, scalar_prefetch = 3 : i64, scratch_operands = 2 : i64, tpu.core_type = #tpu.core_type<tc>, window_params = [{transform_indices = @transform_0, window_bounds = array<i64: 1, 8, 8, 32>}, {transform_indices = @transform_1, window_bounds = array<i64: 1, 8, 8, 32>}, {pipeline_mode = #tpu.pipeline_mode<synchronous>, transform_indices = @transform_2, window_bounds = array<i64: 32, 128>}, {pipeline_mode = #tpu.pipeline_mode<synchronous>, transform_indices = @transform_3, window_bounds = array<i64: 32, 128>}, {pipeline_mode = #tpu.pipeline_mode<synchronous>, transform_indices = @transform_4, window_bounds = array<i64: 1, 128>}, {}]} {
    %0 = arith.index_cast %arg0 : i32 to index
    %1 = memref.load %arg1[%0] : memref<6xi32, #tpu.memory_space<smem>>
    %2 = arith.index_cast %arg0 : i32 to index
    %3 = memref.load %arg2[%2] : memref<6xi32, #tpu.memory_space<smem>>
    %4 = arith.index_cast %arg0 : i32 to index
    %5 = memref.load %arg3[%4] : memref<6xi32, #tpu.memory_space<smem>>
    %c0 = arith.constant 0 : index
    %c0_0 = arith.constant 0 : index
    %6 = vector.load %arg6[%c0, %c0_0] : memref<32x128xf32, #tpu.memory_space<vmem>>, vector<32x128xf32>
    %c0_1 = arith.constant 0 : index
    %c0_2 = arith.constant 0 : index
    %7 = vector.load %arg7[%c0_1, %c0_2] : memref<32x128xf32, #tpu.memory_space<vmem>>, vector<32x128xf32>
    %c0_3 = arith.constant 0 : index
    %c0_4 = arith.constant 0 : index
    %8 = vector.load %arg8[%c0_3, %c0_4] : memref<1x128xf32, #tpu.memory_space<vmem>>, vector<1x128xf32>
    %c0_5 = arith.constant 0 : index
    %c0_6 = arith.constant 0 : index
    %c0_7 = arith.constant 0 : index
    %c0_8 = arith.constant 0 : index
    %9 = vector.load %arg4[%c0_5, %c0_6, %c0_7, %c0_8] : memref<1x8x8x32xf32, #tpu.memory_space<vmem>>, vector<1x8x8x32xf32>
    %10 = vector.shape_cast %9 : vector<1x8x8x32xf32> to vector<8x8x32xf32>
    %c0_9 = arith.constant 0 : index
    %c0_10 = arith.constant 0 : index
    %c0_11 = arith.constant 0 : index
    %c0_12 = arith.constant 0 : index
    %11 = vector.load %arg5[%c0_9, %c0_10, %c0_11, %c0_12] : memref<1x8x8x32xf32, #tpu.memory_space<vmem>>, vector<1x8x8x32xf32>
    %12 = vector.shape_cast %11 : vector<1x8x8x32xf32> to vector<8x8x32xf32>
    %13 = vector.shape_cast %10 : vector<8x8x32xf32> to vector<64x32xf32>
    %14 = vector.shape_cast %12 : vector<8x8x32xf32> to vector<64x32xf32>
    %15 = tpu.transpose %12, [1, 0, 2] : vector<8x8x32xf32> -> vector<8x8x32xf32>
    %16 = vector.shape_cast %15 : vector<8x8x32xf32> to vector<64x32xf32>
    %cst = arith.constant dense<0.000000e+00> : vector<64x128xf32>
    %17 = tpu.matmul %13, %6, %cst {dimension_numbers = #tpu.dot_dimension_numbers<[1], [0], [0], [1], [0, 0, 1, 1], [], []>} : vector<64x32xf32>, vector<32x128xf32>, vector<64x128xf32> -> vector<64x128xf32>
    %cst_13 = arith.constant dense<0.000000e+00> : vector<64x128xf32>
    %18 = tpu.matmul %16, %7, %cst_13 {dimension_numbers = #tpu.dot_dimension_numbers<[1], [0], [0], [1], [0, 0, 1, 1], [], []>} : vector<64x32xf32>, vector<32x128xf32>, vector<64x128xf32> -> vector<64x128xf32>
    %19 = arith.addf %17, %18 : vector<64x128xf32>
    %20 = vector.broadcast %8 : vector<1x128xf32> to vector<64x128xf32>
    %21 = arith.addf %19, %20 : vector<64x128xf32>
    %22 = vector.shape_cast %21 : vector<64x128xf32> to vector<8x8x128xf32>
    %c0_14 = arith.constant 0 : index
    %c0_15 = arith.constant 0 : index
    %c0_16 = arith.constant 0 : index
    %c0_17 = arith.constant 0 : index
    %23 = vector.load %arg10[%c0_14, %c0_15, %c0_16, %c0_17] : memref<2x8x8x128xf32, #tpu.memory_space<vmem>>, vector<1x8x8x128xf32>
    %24 = vector.shape_cast %23 : vector<1x8x8x128xf32> to vector<8x8x128xf32>
    %25 = vector.shape_cast %22 : vector<8x8x128xf32> to vector<1x8x8x128xf32>
    tpu.vector_store %arg10[%c0_14, %c0_15, %c0_16, %c0_17], %25 {strides = array<i32>} : memref<2x8x8x128xf32, #tpu.memory_space<vmem>>, vector<1x8x8x128xf32>,
    %c8_i32 = arith.constant 8 : i32
    %26 = arith.muli %3, %c8_i32 : i32
    %27 = tpu.assume_multiple %26, 8 : i32
    %c8_i32_18 = arith.constant 8 : i32
    %28 = arith.muli %5, %c8_i32_18 : i32
    %29 = tpu.assume_multiple %28, 8 : i32
    %c0_i32 = arith.constant 0 : i32
    %c0_i32_19 = arith.constant 0 : i32
    %c0_i32_20 = arith.constant 0 : i32
    %c0_i32_21 = arith.constant 0 : i32
    %c0_i32_22 = arith.constant 0 : i32
    %30 = tpu.memref_slice %arg10[%c0_i32, %c0_i32_20, %c0_i32_21, %c0_i32_22] : memref<2x8x8x128xf32, #tpu.memory_space<vmem>> -> memref<1x8x8x128xf32, #tpu.memory_space<vmem>>
    %31 = tpu.memref_squeeze %30 : memref<1x8x8x128xf32, #tpu.memory_space<vmem>> -> memref<8x8x128xf32, #tpu.memory_space<vmem>>
    %c0_i32_23 = arith.constant 0 : i32
    %32 = tpu.memref_slice %arg9[%1, %27, %29, %c0_i32_23] : memref<2x16x16x128xf32, #tpu.memory_space<any>> -> memref<1x8x8x128xf32, #tpu.memory_space<any>>
    %33 = tpu.memref_squeeze %32 : memref<1x8x8x128xf32, #tpu.memory_space<any>> -> memref<8x8x128xf32, #tpu.memory_space<any>>
    %34 = tpu.memref_slice %arg11[%c0_i32_19] : memref<2x!tpu.dma_semaphore, #tpu.memory_space<semaphore_mem>> -> memref<1x!tpu.dma_semaphore, #tpu.memory_space<semaphore_mem>>
    %35 = tpu.memref_squeeze %34 : memref<1x!tpu.dma_semaphore, #tpu.memory_space<semaphore_mem>> -> memref<!tpu.dma_semaphore, #tpu.memory_space<semaphore_mem>>
    tpu.enqueue_dma source(%31 : memref<8x8x128xf32, #tpu.memory_space<vmem>>) target(%33 : memref<8x8x128xf32, #tpu.memory_space<any>>) target_semaphore(%35 : memref<!tpu.dma_semaphore, #tpu.memory_space<semaphore_mem>>)
    %36 = arith.cmpi ne, %3, %5 : i32
    %37 = arith.extui %36 : i1 to i32
    %c0_i32_24 = arith.constant 0 : i32
    %38 = arith.cmpi ne, %37, %c0_i32_24 : i32
    scf.if %38 {
      %45 = tpu.transpose %10, [1, 0, 2] : vector<8x8x32xf32> -> vector<8x8x32xf32>
      %46 = vector.shape_cast %45 : vector<8x8x32xf32> to vector<64x32xf32>
      %cst_31 = arith.constant dense<0.000000e+00> : vector<64x128xf32>
      %47 = tpu.matmul %14, %6, %cst_31 {dimension_numbers = #tpu.dot_dimension_numbers<[1], [0], [0], [1], [0, 0, 1, 1], [], []>} : vector<64x32xf32>, vector<32x128xf32>, vector<64x128xf32> -> vector<64x128xf32>
      %cst_32 = arith.constant dense<0.000000e+00> : vector<64x128xf32>
      %48 = tpu.matmul %46, %7, %cst_32 {dimension_numbers = #tpu.dot_dimension_numbers<[1], [0], [0], [1], [0, 0, 1, 1], [], []>} : vector<64x32xf32>, vector<32x128xf32>, vector<64x128xf32> -> vector<64x128xf32>
      %49 = arith.addf %47, %48 : vector<64x128xf32>
      %50 = vector.broadcast %8 : vector<1x128xf32> to vector<64x128xf32>
      %51 = arith.addf %49, %50 : vector<64x128xf32>
      %52 = vector.shape_cast %51 : vector<64x128xf32> to vector<8x8x128xf32>
      %c1 = arith.constant 1 : index
      %c0_33 = arith.constant 0 : index
      %c0_34 = arith.constant 0 : index
      %c0_35 = arith.constant 0 : index
      %53 = vector.load %arg10[%c1, %c0_33, %c0_34, %c0_35] : memref<2x8x8x128xf32, #tpu.memory_space<vmem>>, vector<1x8x8x128xf32>
      %54 = vector.shape_cast %53 : vector<1x8x8x128xf32> to vector<8x8x128xf32>
      %55 = vector.shape_cast %52 : vector<8x8x128xf32> to vector<1x8x8x128xf32>
      tpu.vector_store %arg10[%c1, %c0_33, %c0_34, %c0_35], %55 {strides = array<i32>} : memref<2x8x8x128xf32, #tpu.memory_space<vmem>>, vector<1x8x8x128xf32>,
      %c1_i32 = arith.constant 1 : i32
      %c1_i32_36 = arith.constant 1 : i32
      %c0_i32_37 = arith.constant 0 : i32
      %c0_i32_38 = arith.constant 0 : i32
      %c0_i32_39 = arith.constant 0 : i32
      %56 = tpu.memref_slice %arg10[%c1_i32, %c0_i32_37, %c0_i32_38, %c0_i32_39] : memref<2x8x8x128xf32, #tpu.memory_space<vmem>> -> memref<1x8x8x128xf32, #tpu.memory_space<vmem>>
      %57 = tpu.memref_squeeze %56 : memref<1x8x8x128xf32, #tpu.memory_space<vmem>> -> memref<8x8x128xf32, #tpu.memory_space<vmem>>
      %c0_i32_40 = arith.constant 0 : i32
      %58 = tpu.memref_slice %arg9[%1, %29, %27, %c0_i32_40] : memref<2x16x16x128xf32, #tpu.memory_space<any>> -> memref<1x8x8x128xf32, #tpu.memory_space<any>>
      %59 = tpu.memref_squeeze %58 : memref<1x8x8x128xf32, #tpu.memory_space<any>> -> memref<8x8x128xf32, #tpu.memory_space<any>>
      %60 = tpu.memref_slice %arg11[%c1_i32_36] : memref<2x!tpu.dma_semaphore, #tpu.memory_space<semaphore_mem>> -> memref<1x!tpu.dma_semaphore, #tpu.memory_space<semaphore_mem>>
      %61 = tpu.memref_squeeze %60 : memref<1x!tpu.dma_semaphore, #tpu.memory_space<semaphore_mem>> -> memref<!tpu.dma_semaphore, #tpu.memory_space<semaphore_mem>>
      tpu.enqueue_dma source(%57 : memref<8x8x128xf32, #tpu.memory_space<vmem>>) target(%59 : memref<8x8x128xf32, #tpu.memory_space<any>>) target_semaphore(%61 : memref<!tpu.dma_semaphore, #tpu.memory_space<semaphore_mem>>)
      %c1_i32_41 = arith.constant 1 : i32
      %c1_i32_42 = arith.constant 1 : i32
      %c0_i32_43 = arith.constant 0 : i32
      %c0_i32_44 = arith.constant 0 : i32
      %c0_i32_45 = arith.constant 0 : i32
      %62 = tpu.memref_slice %arg10[%c1_i32_41, %c0_i32_43, %c0_i32_44, %c0_i32_45] : memref<2x8x8x128xf32, #tpu.memory_space<vmem>> -> memref<1x8x8x128xf32, #tpu.memory_space<vmem>>
      %63 = tpu.memref_squeeze %62 : memref<1x8x8x128xf32, #tpu.memory_space<vmem>> -> memref<8x8x128xf32, #tpu.memory_space<vmem>>
      %c0_i32_46 = arith.constant 0 : i32
      %64 = tpu.memref_slice %arg9[%1, %29, %27, %c0_i32_46] : memref<2x16x16x128xf32, #tpu.memory_space<any>> -> memref<1x8x8x128xf32, #tpu.memory_space<any>>
      %65 = tpu.memref_squeeze %64 : memref<1x8x8x128xf32, #tpu.memory_space<any>> -> memref<8x8x128xf32, #tpu.memory_space<any>>
      %66 = tpu.memref_slice %arg11[%c1_i32_42] : memref<2x!tpu.dma_semaphore, #tpu.memory_space<semaphore_mem>> -> memref<1x!tpu.dma_semaphore, #tpu.memory_space<semaphore_mem>>
      %67 = tpu.memref_squeeze %66 : memref<1x!tpu.dma_semaphore, #tpu.memory_space<semaphore_mem>> -> memref<!tpu.dma_semaphore, #tpu.memory_space<semaphore_mem>>
      tpu.wait_dma2 semaphore(%67 : memref<!tpu.dma_semaphore, #tpu.memory_space<semaphore_mem>>) src(%63 : memref<8x8x128xf32, #tpu.memory_space<vmem>>) dst(%65 : memref<8x8x128xf32, #tpu.memory_space<any>>)
    } else {
    }
    %c0_i32_25 = arith.constant 0 : i32
    %c0_i32_26 = arith.constant 0 : i32
    %c0_i32_27 = arith.constant 0 : i32
    %c0_i32_28 = arith.constant 0 : i32
    %c0_i32_29 = arith.constant 0 : i32
    %39 = tpu.memref_slice %arg10[%c0_i32_25, %c0_i32_27, %c0_i32_28, %c0_i32_29] : memref<2x8x8x128xf32, #tpu.memory_space<vmem>> -> memref<1x8x8x128xf32, #tpu.memory_space<vmem>>
    %40 = tpu.memref_squeeze %39 : memref<1x8x8x128xf32, #tpu.memory_space<vmem>> -> memref<8x8x128xf32, #tpu.memory_space<vmem>>
    %c0_i32_30 = arith.constant 0 : i32
    %41 = tpu.memref_slice %arg9[%1, %27, %29, %c0_i32_30] : memref<2x16x16x128xf32, #tpu.memory_space<any>> -> memref<1x8x8x128xf32, #tpu.memory_space<any>>
    %42 = tpu.memref_squeeze %41 : memref<1x8x8x128xf32, #tpu.memory_space<any>> -> memref<8x8x128xf32, #tpu.memory_space<any>>
    %43 = tpu.memref_slice %arg11[%c0_i32_26] : memref<2x!tpu.dma_semaphore, #tpu.memory_space<semaphore_mem>> -> memref<1x!tpu.dma_semaphore, #tpu.memory_space<semaphore_mem>>
    %44 = tpu.memref_squeeze %43 : memref<1x!tpu.dma_semaphore, #tpu.memory_space<semaphore_mem>> -> memref<!tpu.dma_semaphore, #tpu.memory_space<semaphore_mem>>
    tpu.wait_dma2 semaphore(%44 : memref<!tpu.dma_semaphore, #tpu.memory_space<semaphore_mem>>) src(%40 : memref<8x8x128xf32, #tpu.memory_space<vmem>>) dst(%42 : memref<8x8x128xf32, #tpu.memory_space<any>>)
    return
  }
  func.func @transform_0(%arg0: i32, %arg1: memref<6xi32, #tpu.memory_space<smem>>, %arg2: memref<6xi32, #tpu.memory_space<smem>>, %arg3: memref<6xi32, #tpu.memory_space<smem>>) -> (i32, i32, i32, i32) {
    %0 = arith.index_cast %arg0 : i32 to index
    %1 = memref.load %arg1[%0] : memref<6xi32, #tpu.memory_space<smem>>
    %2 = arith.index_cast %arg0 : i32 to index
    %3 = memref.load %arg2[%2] : memref<6xi32, #tpu.memory_space<smem>>
    %4 = arith.index_cast %arg0 : i32 to index
    %5 = memref.load %arg3[%4] : memref<6xi32, #tpu.memory_space<smem>>
    %c0_i32 = arith.constant 0 : i32
    %c0_i32_0 = arith.constant 0 : i32
    return %1, %3, %5, %c0_i32 : i32, i32, i32, i32
  }
  func.func @transform_1(%arg0: i32, %arg1: memref<6xi32, #tpu.memory_space<smem>>, %arg2: memref<6xi32, #tpu.memory_space<smem>>, %arg3: memref<6xi32, #tpu.memory_space<smem>>) -> (i32, i32, i32, i32) {
    %0 = arith.index_cast %arg0 : i32 to index
    %1 = memref.load %arg1[%0] : memref<6xi32, #tpu.memory_space<smem>>
    %2 = arith.index_cast %arg0 : i32 to index
    %3 = memref.load %arg3[%2] : memref<6xi32, #tpu.memory_space<smem>>
    %4 = arith.index_cast %arg0 : i32 to index
    %5 = memref.load %arg2[%4] : memref<6xi32, #tpu.memory_space<smem>>
    %c0_i32 = arith.constant 0 : i32
    %c0_i32_0 = arith.constant 0 : i32
    return %1, %3, %5, %c0_i32 : i32, i32, i32, i32
  }
  func.func @transform_2(%arg0: i32, %arg1: memref<6xi32, #tpu.memory_space<smem>>, %arg2: memref<6xi32, #tpu.memory_space<smem>>, %arg3: memref<6xi32, #tpu.memory_space<smem>>) -> (i32, i32) {
    %c0_i32 = arith.constant 0 : i32
    %c0_i32_0 = arith.constant 0 : i32
    %c0_i32_1 = arith.constant 0 : i32
    return %c0_i32, %c0_i32_0 : i32, i32
  }
  func.func @transform_3(%arg0: i32, %arg1: memref<6xi32, #tpu.memory_space<smem>>, %arg2: memref<6xi32, #tpu.memory_space<smem>>, %arg3: memref<6xi32, #tpu.memory_space<smem>>) -> (i32, i32) {
    %c0_i32 = arith.constant 0 : i32
    %c0_i32_0 = arith.constant 0 : i32
    %c0_i32_1 = arith.constant 0 : i32
    return %c0_i32, %c0_i32_0 : i32, i32
  }
  func.func @transform_4(%arg0: i32, %arg1: memref<6xi32, #tpu.memory_space<smem>>, %arg2: memref<6xi32, #tpu.memory_space<smem>>, %arg3: memref<6xi32, #tpu.memory_space<smem>>) -> (i32, i32) {
    %c0_i32 = arith.constant 0 : i32
    %c0_i32_0 = arith.constant 0 : i32
    %c0_i32_1 = arith.constant 0 : i32
    return %c0_i32, %c0_i32_0 : i32, i32
  }
}

</mosaic_0001>

<llo_original>
// kernel: tpu_custom_call.1
$region0: #{tpu_custom_call.1}
  #allocation0 [shape = 'u32[]', space=smem, size = 0x4, offset = 0x4, fixed_abs, tag = 'smem constant byte address 0x4 - core index']
  #allocation1 [shape = 'u32[144,128]{1,0:T(1,128)}', space=vmem, size = 0x12000, scoped, tag = 'internal scratch']
  #allocation2 [shape = 'f32[2,8,8,128]{3,2,1,0:T(8,128)}', space=vmem, size = 0x10000, scoped, tag = 'scratch operand']
  #allocation3 [shape = 's32[2]{0}', space=sflag, size = 0x8, scoped, tag = 'scratch operand']
  #allocation4 [shape = 's32[1]{0}', space=sflag, size = 0x4, scoped, tag = 'scoped memory for tpu_custom_call.1']
  #allocation5 [shape = 'u8[512]{0}', space=smem, size = 0x200, scoped, tag = 'prefetched SMEM operand 0']
  #allocation6 [shape = 'u8[512]{0}', space=smem, size = 0x200, scoped, tag = 'prefetched SMEM operand 1']
  #allocation7 [shape = 'u8[512]{0}', space=smem, size = 0x200, scoped, tag = 'prefetched SMEM operand 2']
  #allocation16 [shape = 's32[]', space=sflag, size = 0x4, offset = 0, fixed_abs, tag = 'sflag constant byte address 0x0 - dummy sync flag']
  #allocation17 [shape = 's32[]', space=sflag, size = 0x4, offset = 0, fixed_abs, tag = 'sflag constant byte address 0x0 - dummy sync flag']
  %s0 = inlined_call_operand.hbm [shape: s32[6], index: 0, kind: input, shape index: {}]
  %s1 = inlined_call_operand.hbm [shape: s32[6], index: 1, kind: input, shape index: {}]
  %s2 = inlined_call_operand.hbm [shape: s32[6], index: 2, kind: input, shape index: {}]
  %s3 = inlined_call_operand.hbm [shape: f32[2,16,16,32], index: 3, kind: input, shape index: {}]
  %s4 = inlined_call_operand.hbm [shape: f32[2,16,16,32], index: 4, kind: input, shape index: {}]
  %s5 = inlined_call_operand.hbm [shape: f32[32,128], index: 5, kind: input, shape index: {}]
  %s6 = inlined_call_operand.hbm [shape: f32[32,128], index: 6, kind: input, shape index: {}]
  %s7 = inlined_call_operand.hbm [shape: f32[1,128], index: 7, kind: input, shape index: {}]
  %s8 = inlined_call_operand.hbm [shape: f32[2,16,16,128], index: 8, kind: output, shape index: {}]
  %s9 = sld [smem:[#allocation0]]
  $region65: #{tpu_custom_call.1} parent=0
    _
  %s11 = ssub.s32 1, %s9
  %s12 = scalar_select 0, %s11, %s9
  %14 = dma.hbm_to_smem %s0, 16, [#allocation5], [#allocation4]
  %16 = dma.hbm_to_smem %s1, 16, [#allocation6], [#allocation4]
  %18 = dma.hbm_to_smem %s2, 16, [#allocation7], [#allocation4]
  %19 = dma.done [#allocation4], 48
  %20 = sfence
  $region1: #{tpu_custom_call.1} parent=0
    #allocation8 [shape = 'u8[65536]{0}', space=vmem, size = 0x10000, scoped, tag = 'input window, operand 3']
    #allocation9 [shape = 's32[2]{0}', space=sflag, size = 0x8, scoped, tag = 'scoped memory for tpu_custom_call.1']
    #allocation10 [shape = 'u8[65536]{0}', space=vmem, size = 0x10000, scoped, tag = 'input window, operand 4']
    #allocation11 [shape = 's32[2]{0}', space=sflag, size = 0x8, scoped, tag = 'scoped memory for tpu_custom_call.1']
    #allocation12 [shape = 'u8[16384]{0}', space=vmem, size = 0x4000, scoped, tag = 'input window, operand 5, single buffered']
    #allocation13 [shape = 'u8[16384]{0}', space=vmem, size = 0x4000, scoped, tag = 'input window, operand 6, single buffered']
    #allocation14 [shape = 's32[1]{0}', space=sflag, size = 0x4, scoped, tag = 'scoped memory for tpu_custom_call.1']
    #allocation15 [shape = 'u8[512]{0}', space=vmem, size = 0x400, scoped, tag = 'input window, operand 7, single buffered']
    %21 = vsyncpa [#allocation9], 0
    %s22 = scalar_lea.sflag [#allocation9], 1
    %23 = vsyncpa %s22, 0
    %24 = vsyncpa [#allocation11], 0
    %s25 = scalar_lea.sflag [#allocation11], 1
    %26 = vsyncpa %s25, 0
    %27 = vsyncpa [#allocation14], 0
    loop: start=0, step=1, limit=7
    $region2: #{tpu_custom_call.1} parent=1 // loop_pre_header
      _
    $region3: #{tpu_custom_call.1} parent=1 // loop_header
      %s29 = sphi 0, %s33
      %p30 = scmp.ge.s32.totalorder %s29, 7
      %s48 = sphi 0, %s50
      %s51 = sphi 0, %s48
      %s61 = sphi 0, %s51
      %s77 = sphi 0, %s79
      %s80 = sphi 0, %s77
      %s90 = sphi 0, %s80
      %s94 = sphi 0, %s94
      %s96 = sphi 0, %s94
      %s104 = sphi 0, %s96
      %s108 = sphi 0, %s108
      %s110 = sphi 0, %s108
      %s118 = sphi 0, %s110
      %s122 = sphi 0, %s122
      %s124 = sphi 0, %s122
      %s132 = sphi 0, %s124
    $region4: #{tpu_custom_call.1} parent=1 // loop_header_branch
      %32 = sbr.rel (%p30) target = $region8
    $region5: #{tpu_custom_call.1} parent=1 // loop_body
      %s34 = ssub.s32 %s29, 1
      %s35 = sadd.s32 %s29, 1
      %s36 = sld [smem:[#allocation5 + %s29]]
      %s37 = sld [smem:[#allocation6 + %s29]]
      %s38 = sld [smem:[#allocation7 + %s29]]
      %s39 = sld [smem:[#allocation5 + %s35]]
      %s40 = sld [smem:[#allocation6 + %s35]]
      %s41 = sld [smem:[#allocation7 + %s35]]
      %s42 = ssub.s32 %s36, %s39
      %s43 = ssub.s32 %s37, %s40
      %s44 = sor.u32 %s42, %s43
      %s45 = ssub.s32 %s38, %s41
      %s46 = sor.u32 %s44, %s45
      %p47 = scmp.eq.s32.totalorder %s46, 0
      %s49 = sadd.s32 %s48, 1
      %s50 = scalar_select %p47, %s48, %s49
      %p52 = pneg %p47
      %p53 = scmp.eq.s32.totalorder %s29, 5
      %p54 = por %p52, %p53
      %p55 = scmp.ne.s32.totalorder %s48, %s51
      %p56 = scmp.eq.s32.totalorder %s29, 0
      %p57 = por %p55, %p56
      %p58 = scmp.ne.s32.totalorder %s48, %s51
      %p59 = scmp.eq.s32.totalorder %s34, 5
      %p60 = por %p58, %p59
      %p62 = scmp.ne.s32.totalorder %s51, %s61
      %p63 = scmp.eq.s32.totalorder %s34, 0
      %p64 = por %p62, %p63
      %s65 = sld [smem:[#allocation5 + %s29]]
      %s66 = sld [smem:[#allocation7 + %s29]]
      %s67 = sld [smem:[#allocation6 + %s29]]
      %s68 = sld [smem:[#allocation5 + %s35]]
      %s69 = sld [smem:[#allocation7 + %s35]]
      %s70 = sld [smem:[#allocation6 + %s35]]
      %s71 = ssub.s32 %s65, %s68
      %s72 = ssub.s32 %s66, %s69
      %s73 = sor.u32 %s71, %s72
      %s74 = ssub.s32 %s67, %s70
      %s75 = sor.u32 %s73, %s74
      %p76 = scmp.eq.s32.totalorder %s75, 0
      %s78 = sadd.s32 %s77, 1
      %s79 = scalar_select %p76, %s77, %s78
      %p81 = pneg %p76
      %p82 = scmp.eq.s32.totalorder %s29, 5
      %p83 = por %p81, %p82
      %p84 = scmp.ne.s32.totalorder %s77, %s80
      %p85 = scmp.eq.s32.totalorder %s29, 0
      %p86 = por %p84, %p85
      %p87 = scmp.ne.s32.totalorder %s77, %s80
      %p88 = scmp.eq.s32.totalorder %s34, 5
      %p89 = por %p87, %p88
      %p91 = scmp.ne.s32.totalorder %s80, %s90
      %p92 = scmp.eq.s32.totalorder %s34, 0
      %p93 = por %p91, %p92
      %s95 = sadd.s32 %s94, 1
      %p97 = scmp.eq.s32.totalorder %s29, 5
      %p98 = scmp.ne.s32.totalorder %s94, %s96
      %p99 = scmp.eq.s32.totalorder %s29, 0
      %p100 = por %p98, %p99
      %p101 = scmp.ne.s32.totalorder %s94, %s96
      %p102 = scmp.eq.s32.totalorder %s34, 5
      %p103 = por %p101, %p102
      %p105 = scmp.ne.s32.totalorder %s96, %s104
      %p106 = scmp.eq.s32.totalorder %s34, 0
      %p107 = por %p105, %p106
      %s109 = sadd.s32 %s108, 1
      %p111 = scmp.eq.s32.totalorder %s29, 5
      %p112 = scmp.ne.s32.totalorder %s108, %s110
      %p113 = scmp.eq.s32.totalorder %s29, 0
      %p114 = por %p112, %p113
      %p115 = scmp.ne.s32.totalorder %s108, %s110
      %p116 = scmp.eq.s32.totalorder %s34, 5
      %p117 = por %p115, %p116
      %p119 = scmp.ne.s32.totalorder %s110, %s118
      %p120 = scmp.eq.s32.totalorder %s34, 0
      %p121 = por %p119, %p120
      %s123 = sadd.s32 %s122, 1
      %p125 = scmp.eq.s32.totalorder %s29, 5
      %p126 = scmp.ne.s32.totalorder %s122, %s124
      %p127 = scmp.eq.s32.totalorder %s29, 0
      %p128 = por %p126, %p127
      %p129 = scmp.ne.s32.totalorder %s122, %s124
      %p130 = scmp.eq.s32.totalorder %s34, 5
      %p131 = por %p129, %p130
      %p133 = scmp.ne.s32.totalorder %s124, %s132
      %p134 = scmp.eq.s32.totalorder %s34, 0
      %p135 = por %p133, %p134
      %p136 = scmp.le.s32.totalorder 1, %s29
      // Predicated region
      $region9: #{tpu_custom_call.1} parent=5 // pred_check
        %p137 = pneg %p136
      $region10: #{tpu_custom_call.1} parent=5 // pred_check_branch
        %139 = sbr.rel (%p137) target = $region12
      $region11: #{tpu_custom_call.1} parent=5 // pred_region
        %s140 = ssub.s32 %s29, 1
        // Predicated region
        $region13: #{tpu_custom_call.1} parent=11 // pred_check
          %p141 = pneg %p107
        $region14: #{tpu_custom_call.1} parent=11 // pred_check_branch
          %143 = sbr.rel (%p141) target = $region16
        $region15: #{tpu_custom_call.1} parent=11 // pred_region
          %s145 = ssub.s32 512, 512
          %146 = vsyncadd [#allocation11], %s145
          %s147 = sshll.u32 [#allocation12], 4
          %s148 = int_to_ptr.vmem [resolvable:$true] %s147
          %153 = dma.hbm_to_vmem [thread:$0]  %s5, 512, %s148, [#allocation11], 128, 128, 8
        $region16: #{tpu_custom_call.1} parent=11 // pred_fallthru
          _
        // Predicated region
        $region17: #{tpu_custom_call.1} parent=11 // pred_check
          %p154 = pneg %p121
        $region18: #{tpu_custom_call.1} parent=11 // pred_check_branch
          %156 = sbr.rel (%p154) target = $region20
        $region19: #{tpu_custom_call.1} parent=11 // pred_region
          %s158 = ssub.s32 512, 512
          %159 = vsyncadd [#allocation14], %s158
          %s160 = sshll.u32 [#allocation13], 4
          %s161 = int_to_ptr.vmem [resolvable:$true] %s160
          %166 = dma.hbm_to_vmem [thread:$0]  %s6, 512, %s161, [#allocation14], 128, 128, 8
        $region20: #{tpu_custom_call.1} parent=11 // pred_fallthru
          _
        // Predicated region
        $region21: #{tpu_custom_call.1} parent=11 // pred_check
          %p167 = pneg %p135
        $region22: #{tpu_custom_call.1} parent=11 // pred_check_branch
          %169 = sbr.rel (%p167) target = $region24
        $region23: #{tpu_custom_call.1} parent=11 // pred_region
          %s171 = ssub.s32 16, 16
          %172 = vsyncadd [#allocation14], %s171
          %s174 = sshll.u32 [#allocation15], 4
          %s175 = int_to_ptr.vmem [resolvable:$true] %s174
          %177 = dma.hbm_to_vmem [thread:$0]  %s7, 16, %s175, [#allocation14]
        $region24: #{tpu_custom_call.1} parent=11 // pred_fallthru
          _
      $region12: #{tpu_custom_call.1} parent=5 // pred_fallthru
        _
      %p178 = scmp.lt.s32.totalorder %s29, 6
      // Predicated region
      $region25: #{tpu_custom_call.1} parent=5 // pred_check
        %p179 = pneg %p178
      $region26: #{tpu_custom_call.1} parent=5 // pred_check_branch
        %181 = sbr.rel (%p179) target = $region28
      $region27: #{tpu_custom_call.1} parent=5 // pred_region
        // Predicated region
        $region29: #{tpu_custom_call.1} parent=27 // pred_check
          %p182 = pneg %p57
        $region30: #{tpu_custom_call.1} parent=27 // pred_check_branch
          %184 = sbr.rel (%p182) target = $region32
        $region31: #{tpu_custom_call.1} parent=27 // pred_region
          %s185 = sand.u32 %s48, 1
          %s186 = scalar_lea.sflag [#allocation9], %s185
          %s187 = sand.u32 %s48, 1
          %s188 = smul.addr %s187, 64
          %s189 = scalar_lea.vmem [#allocation8], %s188
          %s190 = sld [smem:[#allocation5 + %s29]]
          %s191 = sld [smem:[#allocation6 + %s29]]
          %s192 = sld [smem:[#allocation7 + %s29]]
          %s193 = smul.u32 8, %s191
          %s195 = ssub.s32 1024, 1024
          %196 = vsyncadd %s186, %s195
          %s197 = smul.addr %s193, 2
          %s198 = sadd.s32 %s192, %s197
          %s199 = smul.addr %s190, 32
          %s200 = sadd.s32 %s198, %s199
          %s201 = smul.addr %s200, 128
          %s202 = scalar_lea.hbm %s3, %s201
          %s203 = sshll.u32 %s189, 4
          %s204 = int_to_ptr.vmem [resolvable:$true] %s203
          %209 = dma.hbm_to_vmem [thread:$0]  %s202, 1024, %s204, %s186, 256, 128, 8
        $region32: #{tpu_custom_call.1} parent=27 // pred_fallthru
          _
        // Predicated region
        $region33: #{tpu_custom_call.1} parent=27 // pred_check
          %p210 = pneg %p86
        $region34: #{tpu_custom_call.1} parent=27 // pred_check_branch
          %212 = sbr.rel (%p210) target = $region36
        $region35: #{tpu_custom_call.1} parent=27 // pred_region
          %s213 = sand.u32 %s29, 1
          %s214 = scalar_lea.sflag [#allocation11], %s213
          %s215 = sand.u32 %s77, 1
          %s216 = smul.addr %s215, 64
          %s217 = scalar_lea.vmem [#allocation10], %s216
          %s218 = sld [smem:[#allocation5 + %s29]]
          %s219 = sld [smem:[#allocation7 + %s29]]
          %s220 = sld [smem:[#allocation6 + %s29]]
          %s221 = smul.u32 8, %s219
          %s223 = ssub.s32 1024, 1024
          %224 = vsyncadd %s214, %s223
          %s225 = smul.addr %s221, 2
          %s226 = sadd.s32 %s220, %s225
          %s227 = smul.addr %s218, 32
          %s228 = sadd.s32 %s226, %s227
          %s229 = smul.addr %s228, 128
          %s230 = scalar_lea.hbm %s4, %s229
          %s231 = sshll.u32 %s217, 4
          %s232 = int_to_ptr.vmem [resolvable:$true] %s231
          %237 = dma.hbm_to_vmem [thread:$0]  %s230, 1024, %s232, %s214, 256, 128, 8
        $region36: #{tpu_custom_call.1} parent=27 // pred_fallthru
          _
      $region28: #{tpu_custom_call.1} parent=5 // pred_fallthru
        _
      %p238 = scmp.le.s32.totalorder 1, %s29
      // Predicated region
      $region37: #{tpu_custom_call.1} parent=5 // pred_check
        %p239 = pneg %p238
      $region38: #{tpu_custom_call.1} parent=5 // pred_check_branch
        %241 = sbr.rel (%p239) target = $region40
      $region39: #{tpu_custom_call.1} parent=5 // pred_region
        %s242 = ssub.s32 %s29, 1
        %s243 = sand.u32 %s51, 1
        %s244 = scalar_lea.sflag [#allocation9], %s243
        %s245 = sand.u32 %s51, 1
        %s246 = smul.addr %s245, 64
        %s247 = scalar_lea.vmem [#allocation8], %s246
        // Predicated region
        $region41: #{tpu_custom_call.1} parent=39 // pred_check
          %p248 = pneg %p64
        $region42: #{tpu_custom_call.1} parent=39 // pred_check_branch
          %250 = sbr.rel (%p248) target = $region44
        $region43: #{tpu_custom_call.1} parent=39 // pred_region
          %251 = dma.done %s244, 1024
        $region44: #{tpu_custom_call.1} parent=39 // pred_fallthru
          _
        %s252 = sand.u32 %s34, 1
        %s253 = scalar_lea.sflag [#allocation11], %s252
        %s254 = sand.u32 %s80, 1
        %s255 = smul.addr %s254, 64
        %s256 = scalar_lea.vmem [#allocation10], %s255
        // Predicated region
        $region45: #{tpu_custom_call.1} parent=39 // pred_check
          %p257 = pneg %p93
        $region46: #{tpu_custom_call.1} parent=39 // pred_check_branch
          %259 = sbr.rel (%p257) target = $region48
        $region47: #{tpu_custom_call.1} parent=39 // pred_region
          %260 = dma.done %s253, 1024
        $region48: #{tpu_custom_call.1} parent=39 // pred_fallthru
          _
        // Predicated region
        $region49: #{tpu_custom_call.1} parent=39 // pred_check
          %p261 = pneg %p107
        $region50: #{tpu_custom_call.1} parent=39 // pred_check_branch
          %263 = sbr.rel (%p261) target = $region52
        $region51: #{tpu_custom_call.1} parent=39 // pred_region
          %264 = dma.done [#allocation11], 512
        $region52: #{tpu_custom_call.1} parent=39 // pred_fallthru
          _
        // Predicated region
        $region53: #{tpu_custom_call.1} parent=39 // pred_check
          %p265 = pneg %p121
        $region54: #{tpu_custom_call.1} parent=39 // pred_check_branch
          %267 = sbr.rel (%p265) target = $region56
        $region55: #{tpu_custom_call.1} parent=39 // pred_region
          %268 = dma.done [#allocation14], 512
        $region56: #{tpu_custom_call.1} parent=39 // pred_fallthru
          _
        // Predicated region
        $region57: #{tpu_custom_call.1} parent=39 // pred_check
          %p269 = pneg %p135
        $region58: #{tpu_custom_call.1} parent=39 // pred_check_branch
          %271 = sbr.rel (%p269) target = $region60
        $region59: #{tpu_custom_call.1} parent=39 // pred_region
          %272 = dma.done [#allocation14], 16
        $region60: #{tpu_custom_call.1} parent=39 // pred_fallthru
          _
        %s273 = sand.u32 %s51, 1
        %s274 = scalar_lea.sflag [#allocation9], %s273
        %s275 = sand.u32 %s51, 1
        %s276 = smul.addr %s275, 64
        %s277 = scalar_lea.vmem [#allocation8], %s276
        %p278 = pneg %p64
        %p279 = pneg %p60
        %s280 = sand.u32 %s34, 1
        %s281 = scalar_lea.sflag [#allocation11], %s280
        %s282 = sand.u32 %s80, 1
        %s283 = smul.addr %s282, 64
        %s284 = scalar_lea.vmem [#allocation10], %s283
        %p285 = pneg %p93
        %p286 = pneg %p89
        %p287 = pneg %p107
        %p288 = pneg %p103
        %p289 = pneg %p121
        %p290 = pneg %p117
        %p291 = pneg %p135
        %p292 = pneg %p131
        %s293 = sld [smem:[#allocation5 + %s34]]
        %s294 = sld [smem:[#allocation6 + %s34]]
        %s295 = sld [smem:[#allocation7 + %s34]]
        %s296 = smul.u32 8, %s294
        %s297 = sld [smem:[#allocation5 + %s34]]
        %s298 = sld [smem:[#allocation7 + %s34]]
        %s299 = sld [smem:[#allocation6 + %s34]]
        %s300 = smul.u32 8, %s298
        %s301 = sld [smem:[#allocation5 + %s34]]
        %s302 = sld [smem:[#allocation6 + %s34]]
        %s303 = sld [smem:[#allocation7 + %s34]]
        %v304 = vld [vmem:[#allocation12] sm:$0xff]
        %v305 = vld [vmem:[#allocation12 + $0x8] sm:$0xff]
        %v306 = vld [vmem:[#allocation12 + $0x10] sm:$0xff]
        %v307 = vld [vmem:[#allocation12 + $0x18] sm:$0xff]
        %v308 = vld [vmem:[#allocation13] sm:$0xff]
        %v309 = vld [vmem:[#allocation13 + $0x8] sm:$0xff]
        %v310 = vld [vmem:[#allocation13 + $0x10] sm:$0xff]
        %v311 = vld [vmem:[#allocation13 + $0x18] sm:$0xff]
        %v312 = vld [vmem:[#allocation15] sm:$0x1]
        %v313 = vld [vmem:[%s247] sm:$0xff]
        %v314 = vld [vmem:[%s247 + $0x8] sm:$0xff]
        %v315 = vld [vmem:[%s247 + $0x10] sm:$0xff]
        %v316 = vld [vmem:[%s247 + $0x18] sm:$0xff]
        %v317 = vld [vmem:[%s247 + $0x20] sm:$0xff]
        %v318 = vld [vmem:[%s247 + $0x28] sm:$0xff]
        %v319 = vld [vmem:[%s247 + $0x30] sm:$0xff]
        %v320 = vld [vmem:[%s247 + $0x38] sm:$0xff]
        %v321 = vld [vmem:[%s256] sm:$0xff]
        %v322 = vld [vmem:[%s256 + $0x8] sm:$0xff]
        %v323 = vld [vmem:[%s256 + $0x10] sm:$0xff]
        %v324 = vld [vmem:[%s256 + $0x18] sm:$0xff]
        %v325 = vld [vmem:[%s256 + $0x20] sm:$0xff]
        %v326 = vld [vmem:[%s256 + $0x28] sm:$0xff]
        %v327 = vld [vmem:[%s256 + $0x30] sm:$0xff]
        %v328 = vld [vmem:[%s256 + $0x38] sm:$0xff]
        %v329 = vcombine.low %v321, %v323
        %v330 = vcombine.high %v321, %v323
        %v332 = vunpack.c.l.s4 1983009808
        %v333 = vunpack.c.0.s8 %v332
        %v334 = vlaneseq
        %v335 = vshrl.u32 %v334, 7
        %v336 = vsub.s32 %v333, %v335
        %v337 = vrot.slane %v329, %v336
        %v339 = vunpack.c.l.s4 1983009808
        %v340 = vunpack.c.0.s8 %v339
        %v341 = vlaneseq
        %v342 = vshrl.u32 %v341, 7
        %v343 = vsub.s32 %v340, %v342
        %v344 = vrot.slane %v330, %v343
        %v345 = vcombine.low %v322, %v324
        %v346 = vcombine.high %v322, %v324
        %v348 = vunpack.c.l.s4 1983009808
        %v349 = vunpack.c.0.s8 %v348
        %v350 = vlaneseq
        %v351 = vshrl.u32 %v350, 7
        %v352 = vsub.s32 %v349, %v351
        %v353 = vrot.slane %v345, %v352
        %v355 = vunpack.c.l.s4 1983009808
        %v356 = vunpack.c.0.s8 %v355
        %v357 = vlaneseq
        %v358 = vshrl.u32 %v357, 7
        %v359 = vsub.s32 %v356, %v358
        %v360 = vrot.slane %v346, %v359
        %v361 = vcombine.low %v325, %v327
        %v362 = vcombine.high %v325, %v327
        %v364 = vunpack.c.l.s4 1983009808
        %v365 = vunpack.c.0.s8 %v364
        %v366 = vlaneseq
        %v367 = vshrl.u32 %v366, 7
        %v368 = vsub.s32 %v365, %v367
        %v369 = vrot.slane %v361, %v368
        %v371 = vunpack.c.l.s4 1983009808
        %v372 = vunpack.c.0.s8 %v371
        %v373 = vlaneseq
        %v374 = vshrl.u32 %v373, 7
        %v375 = vsub.s32 %v372, %v374
        %v376 = vrot.slane %v362, %v375
        %v377 = vcombine.low %v326, %v328
        %v378 = vcombine.high %v326, %v328
        %v380 = vunpack.c.l.s4 1983009808
        %v381 = vunpack.c.0.s8 %v380
        %v382 = vlaneseq
        %v383 = vshrl.u32 %v382, 7
        %v384 = vsub.s32 %v381, %v383
        %v385 = vrot.slane %v377, %v384
        %v387 = vunpack.c.l.s4 1983009808
        %v388 = vunpack.c.0.s8 %v387
        %v389 = vlaneseq
        %v390 = vshrl.u32 %v389, 7
        %v391 = vsub.s32 %v388, %v390
        %v392 = vrot.slane %v378, %v391
        %v393 = vcombine.low %v337, %v353
        %v394 = vcombine.high %v337, %v353
        %v396 = vunpack.c.l.s4 1934713408
        %v397 = vunpack.c.0.s8 %v396
        %v398 = vlaneseq
        %v399 = vshrl.u32 %v398, 7
        %v400 = vsub.s32 %v397, %v399
        %v401 = vrot.slane %v393, %v400
        %v403 = vunpack.c.l.s4 1934713408
        %v404 = vunpack.c.0.s8 %v403
        %v405 = vlaneseq
        %v406 = vshrl.u32 %v405, 7
        %v407 = vsub.s32 %v404, %v406
        %v408 = vrot.slane %v394, %v407
        %v409 = vcombine.low %v344, %v360
        %v410 = vcombine.high %v344, %v360
        %v412 = vunpack.c.l.s4 1934713408
        %v413 = vunpack.c.0.s8 %v412
        %v414 = vlaneseq
        %v415 = vshrl.u32 %v414, 7
        %v416 = vsub.s32 %v413, %v415
        %v417 = vrot.slane %v409, %v416
        %v419 = vunpack.c.l.s4 1934713408
        %v420 = vunpack.c.0.s8 %v419
        %v421 = vlaneseq
        %v422 = vshrl.u32 %v421, 7
        %v423 = vsub.s32 %v420, %v422
        %v424 = vrot.slane %v410, %v423
        %v425 = vcombine.low %v369, %v385
        %v426 = vcombine.high %v369, %v385
        %v428 = vunpack.c.l.s4 1934713408
        %v429 = vunpack.c.0.s8 %v428
        %v430 = vlaneseq
        %v431 = vshrl.u32 %v430, 7
        %v432 = vsub.s32 %v429, %v431
        %v433 = vrot.slane %v425, %v432
        %v435 = vunpack.c.l.s4 1934713408
        %v436 = vunpack.c.0.s8 %v435
        %v437 = vlaneseq
        %v438 = vshrl.u32 %v437, 7
        %v439 = vsub.s32 %v436, %v438
        %v440 = vrot.slane %v426, %v439
        %v441 = vcombine.low %v376, %v392
        %v442 = vcombine.high %v376, %v392
        %v444 = vunpack.c.l.s4 1934713408
        %v445 = vunpack.c.0.s8 %v444
        %v446 = vlaneseq
        %v447 = vshrl.u32 %v446, 7
        %v448 = vsub.s32 %v445, %v447
        %v449 = vrot.slane %v441, %v448
        %v451 = vunpack.c.l.s4 1934713408
        %v452 = vunpack.c.0.s8 %v451
        %v453 = vlaneseq
        %v454 = vshrl.u32 %v453, 7
        %v455 = vsub.s32 %v452, %v454
        %v456 = vrot.slane %v442, %v455
        %v457 = vcombine.low %v401, %v433
        %v458 = vcombine.high %v401, %v433
        %v459 = vcombine.low %v408, %v440
        %v460 = vcombine.high %v408, %v440
        %v461 = vcombine.low %v417, %v449
        %v462 = vcombine.high %v417, %v449
        %v463 = vcombine.low %v424, %v456
        %v464 = vcombine.high %v424, %v456
        %vm465 = vcmask 261120
        %v467 = vsel %vm465, %v457, 0
        %v470 = vsel %vm465, %v458, 0
        %v473 = vsel %vm465, %v459, 0
        %v476 = vsel %vm465, %v460, 0
        %v479 = vsel %vm465, %v461, 0
        %v482 = vsel %vm465, %v462, 0
        %v485 = vsel %vm465, %v463, 0
        %v488 = vsel %vm465, %v464, 0
        %490 = vmatprep.subr.mxu0 0.0
        %491 = vmatpush1.msra.mxu0 %v308
        %492 = vmatprep.subr.mxu0 0.0
        %493 = vmatpush1.msra.mxu0 %v309
        %494 = vmatprep.subr.mxu0 0.0
        %495 = vmatpush1.msra.mxu0 %v310
        %496 = vmatprep.subr.mxu0 0.0
        %497 = vmatpush1.msra.mxu0 %v311
        %498 = vmatprep.subr.mxu0 0.0
        %499 = vmatpush1.msra.mxu0 0.0
        %500 = vmatprep.subr.mxu0 0.0
        %501 = vmatpush1.msra.mxu0 0.0
        %502 = vmatprep.subr.mxu0 0.0
        %503 = vmatpush1.msra.mxu0 0.0
        %504 = vmatprep.subr.mxu0 0.0
        %505 = vmatpush1.msra.mxu0 0.0
        %506 = vmatprep.subr.mxu0 0.0
        %507 = vmatpush1.msra.mxu0 0.0
        %508 = vmatprep.subr.mxu0 0.0
        %509 = vmatpush1.msra.mxu0 0.0
        %510 = vmatprep.subr.mxu0 0.0
        %511 = vmatpush1.msra.mxu0 0.0
        %512 = vmatprep.subr.mxu0 0.0
        %513 = vmatpush1.msra.mxu0 0.0
        %514 = vmatprep.subr.mxu0 0.0
        %515 = vmatpush1.msra.mxu0 0.0
        %516 = vmatprep.subr.mxu0 0.0
        %517 = vmatpush1.msra.mxu0 0.0
        %518 = vmatprep.subr.mxu0 0.0
        %519 = vmatpush1.msra.mxu0 0.0
        %520 = vmatprep.subr.mxu0 0.0
        %521 = vmatpush1.msra.mxu0 0.0
        %522 = vmatprep.subr.mxu0 0.0
        %523 = vmatpush1.msra.mxu0 0.0
        %524 = vmatprep.subr.mxu0 0.0
        %525 = vmatpush1.msra.mxu0 0.0
        %526 = vmatprep.subr.mxu0 0.0
        %527 = vmatpush1.msra.mxu0 0.0
        %528 = vmatprep.subr.mxu0 0.0
        %529 = vmatpush1.msra.mxu0 0.0
        %530 = vmatprep.subr.mxu0 0.0
        %531 = vmatpush1.msra.mxu0 0.0
        %532 = vmatprep.subr.mxu0 0.0
        %533 = vmatpush1.msra.mxu0 0.0
        %534 = vmatprep.subr.mxu0 0.0
        %535 = vmatpush1.msra.mxu0 0.0
        %536 = vmatprep.subr.mxu0 0.0
        %537 = vmatpush1.msra.mxu0 0.0
        %538 = vmatprep.subr.mxu0 0.0
        %539 = vmatpush1.msra.mxu0 0.0
        %540 = vmatprep.subr.mxu0 0.0
        %541 = vmatpush1.msra.mxu0 0.0
        %542 = vmatprep.subr.mxu0 0.0
        %543 = vmatpush1.msra.mxu0 0.0
        %544 = vmatprep.subr.mxu0 0.0
        %545 = vmatpush1.msra.mxu0 0.0
        %546 = vmatprep.subr.mxu0 0.0
        %547 = vmatpush1.msra.mxu0 0.0
        %548 = vmatprep.subr.mxu0 0.0
        %549 = vmatpush1.msra.mxu0 0.0
        %550 = vmatprep.subr.mxu0 0.0
        %551 = vmatpush1.msra.mxu0 0.0
        %552 = vmatprep.subr.mxu0 0.0
        %553 = vmatpush1.msra.mxu0 0.0
        %554 = vmatprep.mubr.f32.mxu0 0.0
        %555 = vmatmul.mubr.f32.gmra.mrb[0].mxu0 %v467
        %v556 = vpop.f32.mrb[0].mxu0
        %v557 = vadd.f32 0.0, %v556
        %v558 = vpop.f32.mrb[0].mxu0
        %559 = vmatprep.mubr.f32.mxu0 0.0
        %560 = vmatmul.mubr.f32.gmra.mrb[0].mxu0 %v470
        %v561 = vpop.f32.mrb[0].mxu0
        %v562 = vadd.f32 0.0, %v561
        %v563 = vpop.f32.mrb[0].mxu0
        %564 = vmatprep.mubr.f32.mxu0 0.0
        %565 = vmatmul.mubr.f32.gmra.mrb[0].mxu0 %v473
        %v566 = vpop.f32.mrb[0].mxu0
        %v567 = vadd.f32 0.0, %v566
        %v568 = vpop.f32.mrb[0].mxu0
        %569 = vmatprep.mubr.f32.mxu0 0.0
        %570 = vmatmul.mubr.f32.gmra.mrb[0].mxu0 %v476
        %v571 = vpop.f32.mrb[0].mxu0
        %v572 = vadd.f32 0.0, %v571
        %v573 = vpop.f32.mrb[0].mxu0
        %574 = vmatprep.mubr.f32.mxu0 0.0
        %575 = vmatmul.mubr.f32.gmra.mrb[0].mxu0 %v479
        %v576 = vpop.f32.mrb[0].mxu0
        %v577 = vadd.f32 0.0, %v576
        %v578 = vpop.f32.mrb[0].mxu0
        %579 = vmatprep.mubr.f32.mxu0 0.0
        %580 = vmatmul.mubr.f32.gmra.mrb[0].mxu0 %v482
        %v581 = vpop.f32.mrb[0].mxu0
        %v582 = vadd.f32 0.0, %v581
        %v583 = vpop.f32.mrb[0].mxu0
        %584 = vmatprep.mubr.f32.mxu0 0.0
        %585 = vmatmul.mubr.f32.gmra.mrb[0].mxu0 %v485
        %v586 = vpop.f32.mrb[0].mxu0
        %v587 = vadd.f32 0.0, %v586
        %v588 = vpop.f32.mrb[0].mxu0
        %589 = vmatprep.mubr.f32.mxu0 0.0
        %590 = vmatmul.mubr.f32.gmra.mrb[0].mxu0 %v488
        %v591 = vpop.f32.mrb[0].mxu0
        %v592 = vadd.f32 0.0, %v591
        %v593 = vpop.f32.mrb[0].mxu0
        %594 = vdwg.mxu0
        %v596 = vsel %vm465, %v313, 0
        %v599 = vsel %vm465, %v314, 0
        %v602 = vsel %vm465, %v315, 0
        %v605 = vsel %vm465, %v316, 0
        %v608 = vsel %vm465, %v317, 0
        %v611 = vsel %vm465, %v318, 0
        %v614 = vsel %vm465, %v319, 0
        %v617 = vsel %vm465, %v320, 0
        %619 = vmatprep.subr.mxu0 0.0
        %620 = vmatpush1.msra.mxu0 %v304
        %621 = vmatprep.subr.mxu0 0.0
        %622 = vmatpush1.msra.mxu0 %v305
        %623 = vmatprep.subr.mxu0 0.0
        %624 = vmatpush1.msra.mxu0 %v306
        %625 = vmatprep.subr.mxu0 0.0
        %626 = vmatpush1.msra.mxu0 %v307
        %627 = vmatprep.subr.mxu0 0.0
        %628 = vmatpush1.msra.mxu0 0.0
        %629 = vmatprep.subr.mxu0 0.0
        %630 = vmatpush1.msra.mxu0 0.0
        %631 = vmatprep.subr.mxu0 0.0
        %632 = vmatpush1.msra.mxu0 0.0
        %633 = vmatprep.subr.mxu0 0.0
        %634 = vmatpush1.msra.mxu0 0.0
        %635 = vmatprep.subr.mxu0 0.0
        %636 = vmatpush1.msra.mxu0 0.0
        %637 = vmatprep.subr.mxu0 0.0
        %638 = vmatpush1.msra.mxu0 0.0
        %639 = vmatprep.subr.mxu0 0.0
        %640 = vmatpush1.msra.mxu0 0.0
        %641 = vmatprep.subr.mxu0 0.0
        %642 = vmatpush1.msra.mxu0 0.0
        %643 = vmatprep.subr.mxu0 0.0
        %644 = vmatpush1.msra.mxu0 0.0
        %645 = vmatprep.subr.mxu0 0.0
        %646 = vmatpush1.msra.mxu0 0.0
        %647 = vmatprep.subr.mxu0 0.0
        %648 = vmatpush1.msra.mxu0 0.0
        %649 = vmatprep.subr.mxu0 0.0
        %650 = vmatpush1.msra.mxu0 0.0
        %651 = vmatprep.subr.mxu0 0.0
        %652 = vmatpush1.msra.mxu0 0.0
        %653 = vmatprep.subr.mxu0 0.0
        %654 = vmatpush1.msra.mxu0 0.0
        %655 = vmatprep.subr.mxu0 0.0
        %656 = vmatpush1.msra.mxu0 0.0
        %657 = vmatprep.subr.mxu0 0.0
        %658 = vmatpush1.msra.mxu0 0.0
        %659 = vmatprep.subr.mxu0 0.0
        %660 = vmatpush1.msra.mxu0 0.0
        %661 = vmatprep.subr.mxu0 0.0
        %662 = vmatpush1.msra.mxu0 0.0
        %663 = vmatprep.subr.mxu0 0.0
        %664 = vmatpush1.msra.mxu0 0.0
        %665 = vmatprep.subr.mxu0 0.0
        %666 = vmatpush1.msra.mxu0 0.0
        %667 = vmatprep.subr.mxu0 0.0
        %668 = vmatpush1.msra.mxu0 0.0
        %669 = vmatprep.subr.mxu0 0.0
        %670 = vmatpush1.msra.mxu0 0.0
        %671 = vmatprep.subr.mxu0 0.0
        %672 = vmatpush1.msra.mxu0 0.0
        %673 = vmatprep.subr.mxu0 0.0
        %674 = vmatpush1.msra.mxu0 0.0
        %675 = vmatprep.subr.mxu0 0.0
        %676 = vmatpush1.msra.mxu0 0.0
        %677 = vmatprep.subr.mxu0 0.0
        %678 = vmatpush1.msra.mxu0 0.0
        %679 = vmatprep.subr.mxu0 0.0
        %680 = vmatpush1.msra.mxu0 0.0
        %681 = vmatprep.subr.mxu0 0.0
        %682 = vmatpush1.msra.mxu0 0.0
        %683 = vmatprep.mubr.f32.mxu0 0.0
        %684 = vmatmul.mubr.f32.gmra.mrb[0].mxu0 %v596
        %v685 = vpop.f32.mrb[0].mxu0
        %v686 = vadd.f32 %v557, %v685
        %v687 = vpop.f32.mrb[0].mxu0
        %688 = vmatprep.mubr.f32.mxu0 0.0
        %689 = vmatmul.mubr.f32.gmra.mrb[0].mxu0 %v599
        %v690 = vpop.f32.mrb[0].mxu0
        %v691 = vadd.f32 %v562, %v690
        %v692 = vpop.f32.mrb[0].mxu0
        %693 = vmatprep.mubr.f32.mxu0 0.0
        %694 = vmatmul.mubr.f32.gmra.mrb[0].mxu0 %v602
        %v695 = vpop.f32.mrb[0].mxu0
        %v696 = vadd.f32 %v567, %v695
        %v697 = vpop.f32.mrb[0].mxu0
        %698 = vmatprep.mubr.f32.mxu0 0.0
        %699 = vmatmul.mubr.f32.gmra.mrb[0].mxu0 %v605
        %v700 = vpop.f32.mrb[0].mxu0
        %v701 = vadd.f32 %v572, %v700
        %v702 = vpop.f32.mrb[0].mxu0
        %703 = vmatprep.mubr.f32.mxu0 0.0
        %704 = vmatmul.mubr.f32.gmra.mrb[0].mxu0 %v608
        %v705 = vpop.f32.mrb[0].mxu0
        %v706 = vadd.f32 %v577, %v705
        %v707 = vpop.f32.mrb[0].mxu0
        %708 = vmatprep.mubr.f32.mxu0 0.0
        %709 = vmatmul.mubr.f32.gmra.mrb[0].mxu0 %v611
        %v710 = vpop.f32.mrb[0].mxu0
        %v711 = vadd.f32 %v582, %v710
        %v712 = vpop.f32.mrb[0].mxu0
        %713 = vmatprep.mubr.f32.mxu0 0.0
        %714 = vmatmul.mubr.f32.gmra.mrb[0].mxu0 %v614
        %v715 = vpop.f32.mrb[0].mxu0
        %v716 = vadd.f32 %v587, %v715
        %v717 = vpop.f32.mrb[0].mxu0
        %718 = vmatprep.mubr.f32.mxu0 0.0
        %719 = vmatmul.mubr.f32.gmra.mrb[0].mxu0 %v617
        %v720 = vpop.f32.mrb[0].mxu0
        %v721 = vadd.f32 %v592, %v720
        %v722 = vpop.f32.mrb[0].mxu0
        %723 = vdwg.mxu0
        %v725 = vlaneseq
        %v726 = vshrl.u32 %v725, 7
        %v727 = vsub.s32 0, %v726
        %v728 = vrot.slane %v312, %v727
        %v730 = vadd.f32 %v686, %v728
        %v731 = vadd.f32 %v691, %v728
        %v732 = vadd.f32 %v696, %v728
        %v733 = vadd.f32 %v701, %v728
        %v734 = vadd.f32 %v706, %v728
        %v735 = vadd.f32 %v711, %v728
        %v736 = vadd.f32 %v716, %v728
        %v737 = vadd.f32 %v721, %v728
        %738 = vst [vmem:[#allocation2] sm:$0xff] %v730
        %739 = vst [vmem:[#allocation2 + $0x8] sm:$0xff] %v731
        %740 = vst [vmem:[#allocation2 + $0x10] sm:$0xff] %v732
        %741 = vst [vmem:[#allocation2 + $0x18] sm:$0xff] %v733
        %742 = vst [vmem:[#allocation2 + $0x20] sm:$0xff] %v734
        %743 = vst [vmem:[#allocation2 + $0x28] sm:$0xff] %v735
        %744 = vst [vmem:[#allocation2 + $0x30] sm:$0xff] %v736
        %745 = vst [vmem:[#allocation2 + $0x38] sm:$0xff] %v737
        %s746 = smul.u32 %s302, 8
        %s747 = smul.u32 %s303, 8
        %s748 = smul.u32 %s746, 16
        %s749 = sadd.s32 %s747, %s748
        %s750 = smul.u32 %s301, 256
        %s751 = sadd.s32 %s749, %s750
        %s752 = smul.addr %s751, 16
        %s753 = scalar_lea.hbm %s8, %s752
        %s755 = sshll.u32 [#allocation2], 4
        %s756 = int_to_ptr.vmem [resolvable:$true] %s755
        %758 = dma.vmem_to_hbm [thread:$0]  %s756, 1024, %s753, [#allocation3], 128, 256, 8
        %p759 = scmp.ne.s32.totalorder %s302, %s303
        // Predicated region
        $region61: #{tpu_custom_call.1} parent=39 // pred_check
          %p760 = pneg %p759
        $region62: #{tpu_custom_call.1} parent=39 // pred_check_branch
          %762 = sbr.rel (%p760) target = $region64
        $region63: #{tpu_custom_call.1} parent=39 // pred_region
          %v763 = vcombine.low %v313, %v315
          %v764 = vcombine.high %v313, %v315
          %v766 = vunpack.c.l.s4 1983009808
          %v767 = vunpack.c.0.s8 %v766
          %v768 = vlaneseq
          %v769 = vshrl.u32 %v768, 7
          %v770 = vsub.s32 %v767, %v769
          %v771 = vrot.slane %v763, %v770
          %v773 = vunpack.c.l.s4 1983009808
          %v774 = vunpack.c.0.s8 %v773
          %v775 = vlaneseq
          %v776 = vshrl.u32 %v775, 7
          %v777 = vsub.s32 %v774, %v776
          %v778 = vrot.slane %v764, %v777
          %v779 = vcombine.low %v314, %v316
          %v780 = vcombine.high %v314, %v316
          %v782 = vunpack.c.l.s4 1983009808
          %v783 = vunpack.c.0.s8 %v782
          %v784 = vlaneseq
          %v785 = vshrl.u32 %v784, 7
          %v786 = vsub.s32 %v783, %v785
          %v787 = vrot.slane %v779, %v786
          %v789 = vunpack.c.l.s4 1983009808
          %v790 = vunpack.c.0.s8 %v789
          %v791 = vlaneseq
          %v792 = vshrl.u32 %v791, 7
          %v793 = vsub.s32 %v790, %v792
          %v794 = vrot.slane %v780, %v793
          %v795 = vcombine.low %v317, %v319
          %v796 = vcombine.high %v317, %v319
          %v798 = vunpack.c.l.s4 1983009808
          %v799 = vunpack.c.0.s8 %v798
          %v800 = vlaneseq
          %v801 = vshrl.u32 %v800, 7
          %v802 = vsub.s32 %v799, %v801
          %v803 = vrot.slane %v795, %v802
          %v805 = vunpack.c.l.s4 1983009808
          %v806 = vunpack.c.0.s8 %v805
          %v807 = vlaneseq
          %v808 = vshrl.u32 %v807, 7
          %v809 = vsub.s32 %v806, %v808
          %v810 = vrot.slane %v796, %v809
          %v811 = vcombine.low %v318, %v320
          %v812 = vcombine.high %v318, %v320
          %v814 = vunpack.c.l.s4 1983009808
          %v815 = vunpack.c.0.s8 %v814
          %v816 = vlaneseq
          %v817 = vshrl.u32 %v816, 7
          %v818 = vsub.s32 %v815, %v817
          %v819 = vrot.slane %v811, %v818
          %v821 = vunpack.c.l.s4 1983009808
          %v822 = vunpack.c.0.s8 %v821
          %v823 = vlaneseq
          %v824 = vshrl.u32 %v823, 7
          %v825 = vsub.s32 %v822, %v824
          %v826 = vrot.slane %v812, %v825
          %v827 = vcombine.low %v771, %v787
          %v828 = vcombine.high %v771, %v787
          %v830 = vunpack.c.l.s4 1934713408
          %v831 = vunpack.c.0.s8 %v830
          %v832 = vlaneseq
          %v833 = vshrl.u32 %v832, 7
          %v834 = vsub.s32 %v831, %v833
          %v835 = vrot.slane %v827, %v834
          %v837 = vunpack.c.l.s4 1934713408
          %v838 = vunpack.c.0.s8 %v837
          %v839 = vlaneseq
          %v840 = vshrl.u32 %v839, 7
          %v841 = vsub.s32 %v838, %v840
          %v842 = vrot.slane %v828, %v841
          %v843 = vcombine.low %v778, %v794
          %v844 = vcombine.high %v778, %v794
          %v846 = vunpack.c.l.s4 1934713408
          %v847 = vunpack.c.0.s8 %v846
          %v848 = vlaneseq
          %v849 = vshrl.u32 %v848, 7
          %v850 = vsub.s32 %v847, %v849
          %v851 = vrot.slane %v843, %v850
          %v853 = vunpack.c.l.s4 1934713408
          %v854 = vunpack.c.0.s8 %v853
          %v855 = vlaneseq
          %v856 = vshrl.u32 %v855, 7
          %v857 = vsub.s32 %v854, %v856
          %v858 = vrot.slane %v844, %v857
          %v859 = vcombine.low %v803, %v819
          %v860 = vcombine.high %v803, %v819
          %v862 = vunpack.c.l.s4 1934713408
          %v863 = vunpack.c.0.s8 %v862
          %v864 = vlaneseq
          %v865 = vshrl.u32 %v864, 7
          %v866 = vsub.s32 %v863, %v865
          %v867 = vrot.slane %v859, %v866
          %v869 = vunpack.c.l.s4 1934713408
          %v870 = vunpack.c.0.s8 %v869
          %v871 = vlaneseq
          %v872 = vshrl.u32 %v871, 7
          %v873 = vsub.s32 %v870, %v872
          %v874 = vrot.slane %v860, %v873
          %v875 = vcombine.low %v810, %v826
          %v876 = vcombine.high %v810, %v826
          %v878 = vunpack.c.l.s4 1934713408
          %v879 = vunpack.c.0.s8 %v878
          %v880 = vlaneseq
          %v881 = vshrl.u32 %v880, 7
          %v882 = vsub.s32 %v879, %v881
          %v883 = vrot.slane %v875, %v882
          %v885 = vunpack.c.l.s4 1934713408
          %v886 = vunpack.c.0.s8 %v885
          %v887 = vlaneseq
          %v888 = vshrl.u32 %v887, 7
          %v889 = vsub.s32 %v886, %v888
          %v890 = vrot.slane %v876, %v889
          %v891 = vcombine.low %v835, %v867
          %v892 = vcombine.high %v835, %v867
          %v893 = vcombine.low %v842, %v874
          %v894 = vcombine.high %v842, %v874
          %v895 = vcombine.low %v851, %v883
          %v896 = vcombine.high %v851, %v883
          %v897 = vcombine.low %v858, %v890
          %v898 = vcombine.high %v858, %v890
          %v900 = vsel %vm465, %v891, 0
          %v903 = vsel %vm465, %v892, 0
          %v906 = vsel %vm465, %v893, 0
          %v909 = vsel %vm465, %v894, 0
          %v912 = vsel %vm465, %v895, 0
          %v915 = vsel %vm465, %v896, 0
          %v918 = vsel %vm465, %v897, 0
          %v921 = vsel %vm465, %v898, 0
          %923 = vmatprep.subr.mxu0 0.0
          %924 = vmatpush1.msra.mxu0 %v308
          %925 = vmatprep.subr.mxu0 0.0
          %926 = vmatpush1.msra.mxu0 %v309
          %927 = vmatprep.subr.mxu0 0.0
          %928 = vmatpush1.msra.mxu0 %v310
          %929 = vmatprep.subr.mxu0 0.0
          %930 = vmatpush1.msra.mxu0 %v311
          %931 = vmatprep.subr.mxu0 0.0
          %932 = vmatpush1.msra.mxu0 0.0
          %933 = vmatprep.subr.mxu0 0.0
          %934 = vmatpush1.msra.mxu0 0.0
          %935 = vmatprep.subr.mxu0 0.0
          %936 = vmatpush1.msra.mxu0 0.0
          %937 = vmatprep.subr.mxu0 0.0
          %938 = vmatpush1.msra.mxu0 0.0
          %939 = vmatprep.subr.mxu0 0.0
          %940 = vmatpush1.msra.mxu0 0.0
          %941 = vmatprep.subr.mxu0 0.0
          %942 = vmatpush1.msra.mxu0 0.0
          %943 = vmatprep.subr.mxu0 0.0
          %944 = vmatpush1.msra.mxu0 0.0
          %945 = vmatprep.subr.mxu0 0.0
          %946 = vmatpush1.msra.mxu0 0.0
          %947 = vmatprep.subr.mxu0 0.0
          %948 = vmatpush1.msra.mxu0 0.0
          %949 = vmatprep.subr.mxu0 0.0
          %950 = vmatpush1.msra.mxu0 0.0
          %951 = vmatprep.subr.mxu0 0.0
          %952 = vmatpush1.msra.mxu0 0.0
          %953 = vmatprep.subr.mxu0 0.0
          %954 = vmatpush1.msra.mxu0 0.0
          %955 = vmatprep.subr.mxu0 0.0
          %956 = vmatpush1.msra.mxu0 0.0
          %957 = vmatprep.subr.mxu0 0.0
          %958 = vmatpush1.msra.mxu0 0.0
          %959 = vmatprep.subr.mxu0 0.0
          %960 = vmatpush1.msra.mxu0 0.0
          %961 = vmatprep.subr.mxu0 0.0
          %962 = vmatpush1.msra.mxu0 0.0
          %963 = vmatprep.subr.mxu0 0.0
          %964 = vmatpush1.msra.mxu0 0.0
          %965 = vmatprep.subr.mxu0 0.0
          %966 = vmatpush1.msra.mxu0 0.0
          %967 = vmatprep.subr.mxu0 0.0
          %968 = vmatpush1.msra.mxu0 0.0
          %969 = vmatprep.subr.mxu0 0.0
          %970 = vmatpush1.msra.mxu0 0.0
          %971 = vmatprep.subr.mxu0 0.0
          %972 = vmatpush1.msra.mxu0 0.0
          %973 = vmatprep.subr.mxu0 0.0
          %974 = vmatpush1.msra.mxu0 0.0
          %975 = vmatprep.subr.mxu0 0.0
          %976 = vmatpush1.msra.mxu0 0.0
          %977 = vmatprep.subr.mxu0 0.0
          %978 = vmatpush1.msra.mxu0 0.0
          %979 = vmatprep.subr.mxu0 0.0
          %980 = vmatpush1.msra.mxu0 0.0
          %981 = vmatprep.subr.mxu0 0.0
          %982 = vmatpush1.msra.mxu0 0.0
          %983 = vmatprep.subr.mxu0 0.0
          %984 = vmatpush1.msra.mxu0 0.0
          %985 = vmatprep.subr.mxu0 0.0
          %986 = vmatpush1.msra.mxu0 0.0
          %987 = vmatprep.mubr.f32.mxu0 0.0
          %988 = vmatmul.mubr.f32.gmra.mrb[0].mxu0 %v900
          %v989 = vpop.f32.mrb[0].mxu0
          %v990 = vadd.f32 0.0, %v989
          %v991 = vpop.f32.mrb[0].mxu0
          %992 = vmatprep.mubr.f32.mxu0 0.0
          %993 = vmatmul.mubr.f32.gmra.mrb[0].mxu0 %v903
          %v994 = vpop.f32.mrb[0].mxu0
          %v995 = vadd.f32 0.0, %v994
          %v996 = vpop.f32.mrb[0].mxu0
          %997 = vmatprep.mubr.f32.mxu0 0.0
          %998 = vmatmul.mubr.f32.gmra.mrb[0].mxu0 %v906
          %v999 = vpop.f32.mrb[0].mxu0
          %v1000 = vadd.f32 0.0, %v999
          %v1001 = vpop.f32.mrb[0].mxu0
          %1002 = vmatprep.mubr.f32.mxu0 0.0
          %1003 = vmatmul.mubr.f32.gmra.mrb[0].mxu0 %v909
          %v1004 = vpop.f32.mrb[0].mxu0
          %v1005 = vadd.f32 0.0, %v1004
          %v1006 = vpop.f32.mrb[0].mxu0
          %1007 = vmatprep.mubr.f32.mxu0 0.0
          %1008 = vmatmul.mubr.f32.gmra.mrb[0].mxu0 %v912
          %v1009 = vpop.f32.mrb[0].mxu0
          %v1010 = vadd.f32 0.0, %v1009
          %v1011 = vpop.f32.mrb[0].mxu0
          %1012 = vmatprep.mubr.f32.mxu0 0.0
          %1013 = vmatmul.mubr.f32.gmra.mrb[0].mxu0 %v915
          %v1014 = vpop.f32.mrb[0].mxu0
          %v1015 = vadd.f32 0.0, %v1014
          %v1016 = vpop.f32.mrb[0].mxu0
          %1017 = vmatprep.mubr.f32.mxu0 0.0
          %1018 = vmatmul.mubr.f32.gmra.mrb[0].mxu0 %v918
          %v1019 = vpop.f32.mrb[0].mxu0
          %v1020 = vadd.f32 0.0, %v1019
          %v1021 = vpop.f32.mrb[0].mxu0
          %1022 = vmatprep.mubr.f32.mxu0 0.0
          %1023 = vmatmul.mubr.f32.gmra.mrb[0].mxu0 %v921
          %v1024 = vpop.f32.mrb[0].mxu0
          %v1025 = vadd.f32 0.0, %v1024
          %v1026 = vpop.f32.mrb[0].mxu0
          %1027 = vdwg.mxu0
          %v1029 = vsel %vm465, %v321, 0
          %v1032 = vsel %vm465, %v322, 0
          %v1035 = vsel %vm465, %v323, 0
          %v1038 = vsel %vm465, %v324, 0
          %v1041 = vsel %vm465, %v325, 0
          %v1044 = vsel %vm465, %v326, 0
          %v1047 = vsel %vm465, %v327, 0
          %v1050 = vsel %vm465, %v328, 0
          %1052 = vmatprep.subr.mxu0 0.0
          %1053 = vmatpush1.msra.mxu0 %v304
          %1054 = vmatprep.subr.mxu0 0.0
          %1055 = vmatpush1.msra.mxu0 %v305
          %1056 = vmatprep.subr.mxu0 0.0
          %1057 = vmatpush1.msra.mxu0 %v306
          %1058 = vmatprep.subr.mxu0 0.0
          %1059 = vmatpush1.msra.mxu0 %v307
          %1060 = vmatprep.subr.mxu0 0.0
          %1061 = vmatpush1.msra.mxu0 0.0
          %1062 = vmatprep.subr.mxu0 0.0
          %1063 = vmatpush1.msra.mxu0 0.0
          %1064 = vmatprep.subr.mxu0 0.0
          %1065 = vmatpush1.msra.mxu0 0.0
          %1066 = vmatprep.subr.mxu0 0.0
          %1067 = vmatpush1.msra.mxu0 0.0
          %1068 = vmatprep.subr.mxu0 0.0
          %1069 = vmatpush1.msra.mxu0 0.0
          %1070 = vmatprep.subr.mxu0 0.0
          %1071 = vmatpush1.msra.mxu0 0.0
          %1072 = vmatprep.subr.mxu0 0.0
          %1073 = vmatpush1.msra.mxu0 0.0
          %1074 = vmatprep.subr.mxu0 0.0
          %1075 = vmatpush1.msra.mxu0 0.0
          %1076 = vmatprep.subr.mxu0 0.0
          %1077 = vmatpush1.msra.mxu0 0.0
          %1078 = vmatprep.subr.mxu0 0.0
          %1079 = vmatpush1.msra.mxu0 0.0
          %1080 = vmatprep.subr.mxu0 0.0
          %1081 = vmatpush1.msra.mxu0 0.0
          %1082 = vmatprep.subr.mxu0 0.0
          %1083 = vmatpush1.msra.mxu0 0.0
          %1084 = vmatprep.subr.mxu0 0.0
          %1085 = vmatpush1.msra.mxu0 0.0
          %1086 = vmatprep.subr.mxu0 0.0
          %1087 = vmatpush1.msra.mxu0 0.0
          %1088 = vmatprep.subr.mxu0 0.0
          %1089 = vmatpush1.msra.mxu0 0.0
          %1090 = vmatprep.subr.mxu0 0.0
          %1091 = vmatpush1.msra.mxu0 0.0
          %1092 = vmatprep.subr.mxu0 0.0
          %1093 = vmatpush1.msra.mxu0 0.0
          %1094 = vmatprep.subr.mxu0 0.0
          %1095 = vmatpush1.msra.mxu0 0.0
          %1096 = vmatprep.subr.mxu0 0.0
          %1097 = vmatpush1.msra.mxu0 0.0
          %1098 = vmatprep.subr.mxu0 0.0
          %1099 = vmatpush1.msra.mxu0 0.0
          %1100 = vmatprep.subr.mxu0 0.0
          %1101 = vmatpush1.msra.mxu0 0.0
          %1102 = vmatprep.subr.mxu0 0.0
          %1103 = vmatpush1.msra.mxu0 0.0
          %1104 = vmatprep.subr.mxu0 0.0
          %1105 = vmatpush1.msra.mxu0 0.0
          %1106 = vmatprep.subr.mxu0 0.0
          %1107 = vmatpush1.msra.mxu0 0.0
          %1108 = vmatprep.subr.mxu0 0.0
          %1109 = vmatpush1.msra.mxu0 0.0
          %1110 = vmatprep.subr.mxu0 0.0
          %1111 = vmatpush1.msra.mxu0 0.0
          %1112 = vmatprep.subr.mxu0 0.0
          %1113 = vmatpush1.msra.mxu0 0.0
          %1114 = vmatprep.subr.mxu0 0.0
          %1115 = vmatpush1.msra.mxu0 0.0
          %1116 = vmatprep.mubr.f32.mxu0 0.0
          %1117 = vmatmul.mubr.f32.gmra.mrb[0].mxu0 %v1029
          %v1118 = vpop.f32.mrb[0].mxu0
          %v1119 = vadd.f32 %v990, %v1118
          %v1120 = vpop.f32.mrb[0].mxu0
          %1121 = vmatprep.mubr.f32.mxu0 0.0
          %1122 = vmatmul.mubr.f32.gmra.mrb[0].mxu0 %v1032
          %v1123 = vpop.f32.mrb[0].mxu0
          %v1124 = vadd.f32 %v995, %v1123
          %v1125 = vpop.f32.mrb[0].mxu0
          %1126 = vmatprep.mubr.f32.mxu0 0.0
          %1127 = vmatmul.mubr.f32.gmra.mrb[0].mxu0 %v1035
          %v1128 = vpop.f32.mrb[0].mxu0
          %v1129 = vadd.f32 %v1000, %v1128
          %v1130 = vpop.f32.mrb[0].mxu0
          %1131 = vmatprep.mubr.f32.mxu0 0.0
          %1132 = vmatmul.mubr.f32.gmra.mrb[0].mxu0 %v1038
          %v1133 = vpop.f32.mrb[0].mxu0
          %v1134 = vadd.f32 %v1005, %v1133
          %v1135 = vpop.f32.mrb[0].mxu0
          %1136 = vmatprep.mubr.f32.mxu0 0.0
          %1137 = vmatmul.mubr.f32.gmra.mrb[0].mxu0 %v1041
          %v1138 = vpop.f32.mrb[0].mxu0
          %v1139 = vadd.f32 %v1010, %v1138
          %v1140 = vpop.f32.mrb[0].mxu0
          %1141 = vmatprep.mubr.f32.mxu0 0.0
          %1142 = vmatmul.mubr.f32.gmra.mrb[0].mxu0 %v1044
          %v1143 = vpop.f32.mrb[0].mxu0
          %v1144 = vadd.f32 %v1015, %v1143
          %v1145 = vpop.f32.mrb[0].mxu0
          %1146 = vmatprep.mubr.f32.mxu0 0.0
          %1147 = vmatmul.mubr.f32.gmra.mrb[0].mxu0 %v1047
          %v1148 = vpop.f32.mrb[0].mxu0
          %v1149 = vadd.f32 %v1020, %v1148
          %v1150 = vpop.f32.mrb[0].mxu0
          %1151 = vmatprep.mubr.f32.mxu0 0.0
          %1152 = vmatmul.mubr.f32.gmra.mrb[0].mxu0 %v1050
          %v1153 = vpop.f32.mrb[0].mxu0
          %v1154 = vadd.f32 %v1025, %v1153
          %v1155 = vpop.f32.mrb[0].mxu0
          %1156 = vdwg.mxu0
          %v1157 = vadd.f32 %v1119, %v728
          %v1158 = vadd.f32 %v1124, %v728
          %v1159 = vadd.f32 %v1129, %v728
          %v1160 = vadd.f32 %v1134, %v728
          %v1161 = vadd.f32 %v1139, %v728
          %v1162 = vadd.f32 %v1144, %v728
          %v1163 = vadd.f32 %v1149, %v728
          %v1164 = vadd.f32 %v1154, %v728
          %s1165 = scalar_lea.vmem [#allocation2], 64
          %1166 = vst [vmem:[%s1165] sm:$0xff] %v1157
          %1167 = vst [vmem:[%s1165 + $0x8] sm:$0xff] %v1158
          %1168 = vst [vmem:[%s1165 + $0x10] sm:$0xff] %v1159
          %1169 = vst [vmem:[%s1165 + $0x18] sm:$0xff] %v1160
          %1170 = vst [vmem:[%s1165 + $0x20] sm:$0xff] %v1161
          %1171 = vst [vmem:[%s1165 + $0x28] sm:$0xff] %v1162
          %1172 = vst [vmem:[%s1165 + $0x30] sm:$0xff] %v1163
          %1173 = vst [vmem:[%s1165 + $0x38] sm:$0xff] %v1164
          %s1174 = smul.u32 %s747, 16
          %s1175 = sadd.s32 %s746, %s1174
          %s1176 = sadd.s32 %s1175, %s750
          %s1177 = smul.addr %s1176, 16
          %s1178 = scalar_lea.hbm %s8, %s1177
          %s1179 = scalar_lea.sflag [#allocation3], 1
          %s1181 = sshll.u32 %s1165, 4
          %s1182 = int_to_ptr.vmem [resolvable:$true] %s1181
          %1184 = dma.vmem_to_hbm [thread:$0]  %s1182, 1024, %s1178, %s1179, 128, 256, 8
          %s1185 = smul.u32 8, 8
          %s1186 = smul.u32 %s1185, 1
          %s1187 = sshll.u32 %s1186, 4
          %1188 = dma.done %s1179, %s1187
        $region64: #{tpu_custom_call.1} parent=39 // pred_fallthru
          _
        %s1189 = smul.u32 8, 8
        %s1190 = smul.u32 %s1189, 1
        %s1191 = sshll.u32 %s1190, 4
        %1192 = dma.done [#allocation3], %s1191
      $region40: #{tpu_custom_call.1} parent=5 // pred_fallthru
        _
    $region6: #{tpu_custom_call.1} parent=1 // loop_footer
      %s33 = sadd.s32 1, %s29
    $region7: #{tpu_custom_call.1} parent=1 // loop_footer_branch
      %28 = sbr.rel target = $region3
    $region8: #{tpu_custom_call.1} parent=1 // loop_exit
      _
    %1193 = vsyncpa [#allocation9], 1
    %s1194 = scalar_lea.sflag [#allocation9], 1
    %1195 = vsyncpa %s1194, 1
    %1196 = vsyncpa [#allocation11], 1
    %s1197 = scalar_lea.sflag [#allocation11], 1
    %1198 = vsyncpa %s1197, 1
    %1199 = vsyncpa [#allocation14], 1
  %1200 = vsyncmov [#allocation3]
  %s1201 = vpop.sfrf %1200
  %p1202 = scmp.eq.s32.totalorder %s1201, 0
  %p1203 = pneg %p1202
  %1205 = shalt.err (%p1203)
  %s1206 = scalar_lea.sflag [#allocation3], 1
  %1207 = vsyncmov %s1206
  %s1208 = vpop.sfrf %1207
  %p1209 = scmp.eq.s32.totalorder %s1208, 0
  %p1210 = pneg %p1209
  %1212 = shalt.err (%p1210)

</llo_original>
